<compile_context>
chip_gen: v7x
topology: tpu7x:2x2x1
jax: 0.10.0
libtpu: 0.0.40
codegen_flags: <defaults>
</compile_context>

<pallas_src>
import jax
import jax.numpy as jnp
from jax.experimental import pallas as pl
from jax.experimental.pallas import tpu as pltpu


def _round_up(x, m):
    return ((x + m - 1) // m) * m


def _cdiv(a, b):
    return (a + b - 1) // b


# ---------------------------------------------------------------------------
# Kernels
# ---------------------------------------------------------------------------

def fused_gcn_kernel(x_ref, w_ref, adj_ref, b_ref, o_ref):
    """out[i] += adj[i, k] @ (x[k] @ W1); bias added at the last k step.

    Grid: (row tiles [parallel], K/column tiles [arbitrary]).
    The f32 output block's index_map ignores k, so it stays resident in VMEM
    across the K axis and doubles as the accumulator (no scratch needed).
    """
    k = pl.program_id(1)

    @pl.when(k == 0)
    def _():
        o_ref[...] = jnp.zeros_like(o_ref)

    # Support tile computed on the fly (nfeat is small on this path).
    sup = jnp.dot(x_ref[...], w_ref[...], preferred_element_type=jnp.float32)
    o_ref[...] += jnp.dot(adj_ref[...], sup, preferred_element_type=jnp.float32)

    @pl.when(k == pl.num_programs(1) - 1)
    def _():
        o_ref[...] += b_ref[...]


def support_kernel(x_ref, w_ref, o_ref):
    """support = x @ W1 (row-tiled). Used only on the large-nfeat path."""
    o_ref[...] = jnp.dot(
        x_ref[...], w_ref[...], preferred_element_type=jnp.float32
    ).astype(o_ref.dtype)


def adj_matmul_kernel(adj_ref, sup_ref, b_ref, o_ref):
    """out = adj @ support + b, K-tiled, accumulating directly into o_ref."""
    k = pl.program_id(1)

    @pl.when(k == 0)
    def _():
        o_ref[...] = jnp.zeros_like(o_ref)

    o_ref[...] += jnp.dot(
        adj_ref[...], sup_ref[...], preferred_element_type=jnp.float32
    )

    @pl.when(k == pl.num_programs(1) - 1)
    def _():
        o_ref[...] += b_ref[...]


# ---------------------------------------------------------------------------
# Wrapper
# ---------------------------------------------------------------------------

def gcn_emb_forward(x, adj, w1, b1, *, tile_m=1024, tile_k=1024):
    """Pallas implementation of GCN_emb.forward(x, adj) == gc1(x, adj)."""
    n, nfeat = x.shape
    nhid = w1.shape[1]
    assert adj.shape == (n, n)
    assert w1.shape == (nfeat, nhid)

    # Lane-dense output: pad hidden dim to a multiple of 128 lanes.
    nhid_pad = _round_up(nhid, 128)

    # Clamp tiles for small graphs; keep them multiples of 128.
    n128 = _round_up(n, 128)
    tile_m = min(tile_m, n128)
    tile_k = min(tile_k, n128)
    # v7x has 2 TensorCores sharing the "parallel" row axis: keep >= 2 row tiles
    # whenever the graph is big enough. Irrelevant (harmless) on v5e/v6e.
    if n128 >= 256:
        tile_m = min(tile_m, _round_up(_cdiv(n128, 2), 128))
    assert tile_m % 128 == 0 and tile_k % 128 == 0

    # Independent padding: rows to tile_m, columns (= x/support rows) to tile_k.
    m_pad = _round_up(n, tile_m)
    k_pad = _round_up(n, tile_k)

    f32 = jnp.float32
    x = x.astype(f32)
    adj = adj.astype(f32)

    # adj stays in its stored f32 dtype (no bf16 re-materialization) and is
    # left untouched when N already divides the tiles. Padded x rows are zero,
    # so whatever sits in padded adj columns contributes nothing to real rows.
    if (m_pad, k_pad) != (n, n):
        adj_p = jnp.zeros((m_pad, k_pad), f32).at[:n, :n].set(adj)
    else:
        adj_p = adj
    x_p = x if k_pad == n else jnp.zeros((k_pad, nfeat), f32).at[:n, :].set(x)
    w_p = (w1.astype(f32) if nhid_pad == nhid
           else jnp.zeros((nfeat, nhid_pad), f32).at[:, :nhid].set(w1.astype(f32)))
    b_p = jnp.zeros((1, nhid_pad), f32).at[0, :nhid].set(b1.astype(f32))

    grid = (m_pad // tile_m, k_pad // tile_k)
    cparams = pltpu.CompilerParams(
        dimension_semantics=("parallel", "arbitrary"))

    if nfeat <= nhid_pad:
        # Fused path: support tile computed in-kernel; x stream is smaller than a
        # support stream would be, and no HBM intermediate is written.
        out_p = pl.pallas_call(
            fused_gcn_kernel,
            out_shape=jax.ShapeDtypeStruct((m_pad, nhid_pad), f32),
            grid_spec=pltpu.PrefetchScalarGridSpec(
                num_scalar_prefetch=0,
                grid=grid,
                in_specs=[
                    pl.BlockSpec((tile_k, nfeat), lambda i, k: (k, 0)),     # x
                    pl.BlockSpec((nfeat, nhid_pad), lambda i, k: (0, 0)),   # W1
                    pl.BlockSpec((tile_m, tile_k), lambda i, k: (i, k)),    # adj
                    pl.BlockSpec((1, nhid_pad), lambda i, k: (0, 0)),       # bias
                ],
                out_specs=pl.BlockSpec((tile_m, nhid_pad), lambda i, k: (i, 0)),
            ),
            compiler_params=cparams,
        )(x_p, w_p, adj_p, b_p)
    else:
        # Stage 1: support = x @ W1 (rows tiled by tile_k so they line up with
        # the adj column tiles of stage 2).
        # TODO(synk): K-tile stage 1 over nfeat if nfeat is so large that a
        # (tile_k, nfeat) f32 block no longer fits comfortably in VMEM.
        support = pl.pallas_call(
            support_kernel,
            out_shape=jax.ShapeDtypeStruct((k_pad, nhid_pad), f32),
            grid_spec=pltpu.PrefetchScalarGridSpec(
                num_scalar_prefetch=0,
                grid=(k_pad // tile_k,),
                in_specs=[
                    pl.BlockSpec((tile_k, nfeat), lambda i: (i, 0)),
                    pl.BlockSpec((nfeat, nhid_pad), lambda i: (0, 0)),
                ],
                out_specs=pl.BlockSpec((tile_k, nhid_pad), lambda i: (i, 0)),
            ),
            compiler_params=pltpu.CompilerParams(
                dimension_semantics=("parallel",)),
        )(x_p, w_p)

        # Stage 2: out = adj @ support + b (HBM-bound; accumulate in o_ref).
        out_p = pl.pallas_call(
            adj_matmul_kernel,
            out_shape=jax.ShapeDtypeStruct((m_pad, nhid_pad), f32),
            grid_spec=pltpu.PrefetchScalarGridSpec(
                num_scalar_prefetch=0,
                grid=grid,
                in_specs=[
                    pl.BlockSpec((tile_m, tile_k), lambda i, k: (i, k)),    # adj
                    pl.BlockSpec((tile_k, nhid_pad), lambda i, k: (k, 0)),  # support
                    pl.BlockSpec((1, nhid_pad), lambda i, k: (0, 0)),       # bias
                ],
                out_specs=pl.BlockSpec((tile_m, nhid_pad), lambda i, k: (i, 0)),
            ),
            compiler_params=cparams,
        )(adj_p, support, b_p)

    return out_p[:n, :nhid]


def init_gcn_params(key, nfeat, nhid):
    """Deterministic GCNConv parameter init (uniform(-stdv, stdv), Kipf-style)."""
    kw, kb = jax.random.split(key)
    stdv = 1.0 / jnp.sqrt(jnp.float32(nhid))
    w1 = jax.random.uniform(kw, (nfeat, nhid), jnp.float32, -stdv, stdv)
    b1 = jax.random.uniform(kb, (nhid,), jnp.float32, -stdv, stdv)
    return w1, b1


if __name__ == "__main__":
    # Small shapes consistent with the module: N nodes, nfeat features, nhid hidden.
    N, NFEAT, NHID = 64, 16, 32

    key = jax.random.PRNGKey(0)
    kx, kadj, kparam = jax.random.split(key, 3)

    x = jax.random.normal(kx, (N, NFEAT), jnp.float32)

    # Symmetric row-normalized adjacency (typical GCN preprocessing), dense.
    raw = (jax.random.uniform(kadj, (N, N)) < 0.1).astype(jnp.float32)
    adj = jnp.minimum(raw + raw.T + jnp.eye(N, dtype=jnp.float32), 1.0)
    adj = adj / jnp.sum(adj, axis=1, keepdims=True)

    w1, b1 = init_gcn_params(kparam, NFEAT, NHID)

    out = jax.jit(gcn_emb_forward)(x, adj, w1, b1)
    out = jax.block_until_ready(out)

    # Reference check in plain JAX f32.
    ref = adj @ (x @ w1) + b1[None, :]
    assert out.shape == (N, NHID)
    err = float(jnp.max(jnp.abs(out - ref)))
    assert err < 1e-2, f"max abs error {err}"

    print("KERNEL_OK")
</pallas_src>

<mosaic_0001>
module attributes {stable_mosaic.version = 11 : i64} {
  func.func @fused_gcn_kernel(%arg0: i32, %arg1: i32, %arg2: memref<128x16xf32, #tpu.memory_space<vmem>>, %arg3: memref<16x128xf32, #tpu.memory_space<vmem>>, %arg4: memref<128x128xf32, #tpu.memory_space<vmem>>, %arg5: memref<1x128xf32, #tpu.memory_space<vmem>>, %arg6: memref<128x128xf32, #tpu.memory_space<vmem>>) attributes {dimension_semantics = [#tpu.dimension_semantics<parallel>, #tpu.dimension_semantics<arbitrary>], iteration_bounds = array<i64: 1, 1>, scalar_prefetch = 0 : i64, scratch_operands = 0 : i64, tpu.core_type = #tpu.core_type<tc>, window_params = [{transform_indices = @transform_0, window_bounds = array<i64: 128, 16>}, {pipeline_mode = #tpu.pipeline_mode<synchronous>, transform_indices = @transform_1, window_bounds = array<i64: 16, 128>}, {transform_indices = @transform_2, window_bounds = array<i64: 128, 128>}, {pipeline_mode = #tpu.pipeline_mode<synchronous>, transform_indices = @transform_3, window_bounds = array<i64: 1, 128>}, {transform_indices = @transform_4, window_bounds = array<i64: 128, 128>}]} {
    %c0_i32 = arith.constant 0 : i32
    %0 = arith.cmpi eq, %arg1, %c0_i32 : i32
    %1 = arith.extui %0 : i1 to i32
    %c0_i32_0 = arith.constant 0 : i32
    %2 = arith.cmpi ne, %1, %c0_i32_0 : i32
    scf.if %2 {
      %cst_13 = arith.constant 0.000000e+00 : f32
      %14 = vector.broadcast %cst_13 : f32 to vector<128x128xf32>
      %c0_14 = arith.constant 0 : index
      %c0_15 = arith.constant 0 : index
      %15 = vector.load %arg6[%c0_14, %c0_15] : memref<128x128xf32, #tpu.memory_space<vmem>>, vector<128x128xf32>
      tpu.vector_store %arg6[%c0_14, %c0_15], %14 {strides = array<i32>} : memref<128x128xf32, #tpu.memory_space<vmem>>, vector<128x128xf32>,
    } else {
    }
    %c0 = arith.constant 0 : index
    %c0_1 = arith.constant 0 : index
    %3 = vector.load %arg2[%c0, %c0_1] : memref<128x16xf32, #tpu.memory_space<vmem>>, vector<128x16xf32>
    %c0_2 = arith.constant 0 : index
    %c0_3 = arith.constant 0 : index
    %4 = vector.load %arg3[%c0_2, %c0_3] : memref<16x128xf32, #tpu.memory_space<vmem>>, vector<16x128xf32>
    %cst = arith.constant dense<0.000000e+00> : vector<128x128xf32>
    %5 = tpu.matmul %3, %4, %cst {dimension_numbers = #tpu.dot_dimension_numbers<[1], [0], [0], [1], [0, 0, 1, 1], [], []>} : vector<128x16xf32>, vector<16x128xf32>, vector<128x128xf32> -> vector<128x128xf32>
    %c0_4 = arith.constant 0 : index
    %c0_5 = arith.constant 0 : index
    %6 = vector.load %arg6[%c0_4, %c0_5] : memref<128x128xf32, #tpu.memory_space<vmem>>, vector<128x128xf32>
    %c0_6 = arith.constant 0 : index
    %c0_7 = arith.constant 0 : index
    %7 = vector.load %arg4[%c0_6, %c0_7] : memref<128x128xf32, #tpu.memory_space<vmem>>, vector<128x128xf32>
    %cst_8 = arith.constant dense<0.000000e+00> : vector<128x128xf32>
    %8 = tpu.matmul %7, %5, %cst_8 {dimension_numbers = #tpu.dot_dimension_numbers<[1], [0], [0], [1], [0, 0, 1, 1], [], []>} : vector<128x128xf32>, vector<128x128xf32>, vector<128x128xf32> -> vector<128x128xf32>
    %9 = arith.addf %6, %8 : vector<128x128xf32>
    %c0_9 = arith.constant 0 : index
    %c0_10 = arith.constant 0 : index
    %10 = vector.load %arg6[%c0_9, %c0_10] : memref<128x128xf32, #tpu.memory_space<vmem>>, vector<128x128xf32>
    tpu.vector_store %arg6[%c0_9, %c0_10], %9 {strides = array<i32>} : memref<128x128xf32, #tpu.memory_space<vmem>>, vector<128x128xf32>,
    %c0_i32_11 = arith.constant 0 : i32
    %11 = arith.cmpi eq, %arg1, %c0_i32_11 : i32
    %12 = arith.extui %11 : i1 to i32
    %c0_i32_12 = arith.constant 0 : i32
    %13 = arith.cmpi ne, %12, %c0_i32_12 : i32
    scf.if %13 {
      %c0_13 = arith.constant 0 : index
      %c0_14 = arith.constant 0 : index
      %14 = vector.load %arg6[%c0_13, %c0_14] : memref<128x128xf32, #tpu.memory_space<vmem>>, vector<128x128xf32>
      %c0_15 = arith.constant 0 : index
      %c0_16 = arith.constant 0 : index
      %15 = vector.load %arg5[%c0_15, %c0_16] : memref<1x128xf32, #tpu.memory_space<vmem>>, vector<1x128xf32>
      %16 = vector.broadcast %15 : vector<1x128xf32> to vector<128x128xf32>
      %17 = arith.addf %14, %16 : vector<128x128xf32>
      %c0_17 = arith.constant 0 : index
      %c0_18 = arith.constant 0 : index
      %18 = vector.load %arg6[%c0_17, %c0_18] : memref<128x128xf32, #tpu.memory_space<vmem>>, vector<128x128xf32>
      tpu.vector_store %arg6[%c0_17, %c0_18], %17 {strides = array<i32>} : memref<128x128xf32, #tpu.memory_space<vmem>>, vector<128x128xf32>,
    } else {
    }
    return
  }
  func.func @transform_0(%arg0: i32, %arg1: i32) -> (i32, i32) {
    %c0_i32 = arith.constant 0 : i32
    %c0_i32_0 = arith.constant 0 : i32
    return %arg1, %c0_i32 : i32, i32
  }
  func.func @transform_1(%arg0: i32, %arg1: i32) -> (i32, i32) {
    %c0_i32 = arith.constant 0 : i32
    %c0_i32_0 = arith.constant 0 : i32
    %c0_i32_1 = arith.constant 0 : i32
    return %c0_i32, %c0_i32_0 : i32, i32
  }
  func.func @transform_2(%arg0: i32, %arg1: i32) -> (i32, i32) {
    %c0_i32 = arith.constant 0 : i32
    return %arg0, %arg1 : i32, i32
  }
  func.func @transform_3(%arg0: i32, %arg1: i32) -> (i32, i32) {
    %c0_i32 = arith.constant 0 : i32
    %c0_i32_0 = arith.constant 0 : i32
    %c0_i32_1 = arith.constant 0 : i32
    return %c0_i32, %c0_i32_0 : i32, i32
  }
  func.func @transform_4(%arg0: i32, %arg1: i32) -> (i32, i32) {
    %c0_i32 = arith.constant 0 : i32
    %c0_i32_0 = arith.constant 0 : i32
    return %arg0, %c0_i32 : i32, i32
  }
}

</mosaic_0001>

<llo_original>
// kernel: gcn_emb_forward.1
$region0: #{gcn_emb_forward.1}
  #allocation0 [shape = 'u32[]', space=smem, size = 0x4, offset = 0x4, fixed_abs, tag = 'smem constant byte address 0x4 - core index']
  #allocation1 [shape = 'u32[144,128]{1,0:T(1,128)}', space=vmem, size = 0x12000, scoped, tag = 'internal scratch']
  %s0 = inlined_call_operand.vmem [shape: f32[128,16], index: 0, kind: input, shape index: {}]
  %s1 = inlined_call_operand.vmem [shape: f32[16,128], index: 1, kind: input, shape index: {}]
  %s2 = inlined_call_operand.vmem [shape: f32[128,128], index: 2, kind: input, shape index: {}]
  %s3 = inlined_call_operand.vmem [shape: f32[1,128], index: 3, kind: input, shape index: {}]
  %s4 = inlined_call_operand.vmem [shape: f32[128,128], index: 4, kind: output, shape index: {}]
  %s5 = sld [smem:[#allocation0]]
  $region34: #{gcn_emb_forward.1} parent=0
    _
  %s7 = ssub.s32 1, %s5
  %s8 = scalar_select 0, %s7, %s5
  // Predicated region
  $region2: #{gcn_emb_forward.1} parent=0 // pred_check
    _
  $region3: #{gcn_emb_forward.1} parent=0 // pred_check_branch
    %10 = sbr.rel (0) target = $region5
  $region4: #{gcn_emb_forward.1} parent=0 // pred_region
    _
  $region5: #{gcn_emb_forward.1} parent=0 // pred_fallthru
    _
  // Predicated region
  $region6: #{gcn_emb_forward.1} parent=0 // pred_check
    _
  $region7: #{gcn_emb_forward.1} parent=0 // pred_check_branch
    %12 = sbr.rel (0) target = $region9
  $region8: #{gcn_emb_forward.1} parent=0 // pred_region
    _
  $region9: #{gcn_emb_forward.1} parent=0 // pred_fallthru
    _
  // Predicated region
  $region10: #{gcn_emb_forward.1} parent=0 // pred_check
    _
  $region11: #{gcn_emb_forward.1} parent=0 // pred_check_branch
    %14 = sbr.rel (0) target = $region13
  $region12: #{gcn_emb_forward.1} parent=0 // pred_region
    _
  $region13: #{gcn_emb_forward.1} parent=0 // pred_fallthru
    _
  // Predicated region
  $region14: #{gcn_emb_forward.1} parent=0 // pred_check
    _
  $region15: #{gcn_emb_forward.1} parent=0 // pred_check_branch
    %16 = sbr.rel (0) target = $region17
  $region16: #{gcn_emb_forward.1} parent=0 // pred_region
    _
  $region17: #{gcn_emb_forward.1} parent=0 // pred_fallthru
    _
  %p17 = scmp.eq.s32.totalorder 0, 0
  // Predicated region
  $region18: #{gcn_emb_forward.1} parent=0 // pred_check
    %p18 = pneg %p17
  $region19: #{gcn_emb_forward.1} parent=0 // pred_check_branch
    %20 = sbr.rel (%p18) target = $region21
  $region20: #{gcn_emb_forward.1} parent=0 // pred_region
    %21 = vst [vmem:[%s4] sm:$0xff] 0.0
    %22 = vst [vmem:[%s4 + $0x8] sm:$0xff] 0.0
    %23 = vst [vmem:[%s4 + $0x10] sm:$0xff] 0.0
    %24 = vst [vmem:[%s4 + $0x18] sm:$0xff] 0.0
    %25 = vst [vmem:[%s4 + $0x20] sm:$0xff] 0.0
    %26 = vst [vmem:[%s4 + $0x28] sm:$0xff] 0.0
    %27 = vst [vmem:[%s4 + $0x30] sm:$0xff] 0.0
    %28 = vst [vmem:[%s4 + $0x38] sm:$0xff] 0.0
    %29 = vst [vmem:[%s4 + $0x40] sm:$0xff] 0.0
    %30 = vst [vmem:[%s4 + $0x48] sm:$0xff] 0.0
    %31 = vst [vmem:[%s4 + $0x50] sm:$0xff] 0.0
    %32 = vst [vmem:[%s4 + $0x58] sm:$0xff] 0.0
    %33 = vst [vmem:[%s4 + $0x60] sm:$0xff] 0.0
    %34 = vst [vmem:[%s4 + $0x68] sm:$0xff] 0.0
    %35 = vst [vmem:[%s4 + $0x70] sm:$0xff] 0.0
    %36 = vst [vmem:[%s4 + $0x78] sm:$0xff] 0.0
  $region21: #{gcn_emb_forward.1} parent=0 // pred_fallthru
    _
  %v37 = vld [vmem:[%s0] sm:$0xff]
  %v38 = vld [vmem:[%s0 + $0x8] sm:$0xff]
  %v39 = vld [vmem:[%s0 + $0x10] sm:$0xff]
  %v40 = vld [vmem:[%s0 + $0x18] sm:$0xff]
  %v41 = vld [vmem:[%s0 + $0x20] sm:$0xff]
  %v42 = vld [vmem:[%s0 + $0x28] sm:$0xff]
  %v43 = vld [vmem:[%s0 + $0x30] sm:$0xff]
  %v44 = vld [vmem:[%s0 + $0x38] sm:$0xff]
  %v45 = vld [vmem:[%s0 + $0x40] sm:$0xff]
  %v46 = vld [vmem:[%s0 + $0x48] sm:$0xff]
  %v47 = vld [vmem:[%s0 + $0x50] sm:$0xff]
  %v48 = vld [vmem:[%s0 + $0x58] sm:$0xff]
  %v49 = vld [vmem:[%s0 + $0x60] sm:$0xff]
  %v50 = vld [vmem:[%s0 + $0x68] sm:$0xff]
  %v51 = vld [vmem:[%s0 + $0x70] sm:$0xff]
  %v52 = vld [vmem:[%s0 + $0x78] sm:$0xff]
  %v53 = vld [vmem:[%s1] sm:$0xff]
  %v54 = vld [vmem:[%s1 + $0x8] sm:$0xff]
  %vm55 = vcmask 130048
  %v57 = vsel %vm55, %v37, 0
  %v60 = vsel %vm55, %v38, 0
  %v63 = vsel %vm55, %v39, 0
  %v66 = vsel %vm55, %v40, 0
  %v69 = vsel %vm55, %v41, 0
  %v72 = vsel %vm55, %v42, 0
  %v75 = vsel %vm55, %v43, 0
  %v78 = vsel %vm55, %v44, 0
  %v81 = vsel %vm55, %v45, 0
  %v84 = vsel %vm55, %v46, 0
  %v87 = vsel %vm55, %v47, 0
  %v90 = vsel %vm55, %v48, 0
  %v93 = vsel %vm55, %v49, 0
  %v96 = vsel %vm55, %v50, 0
  %v99 = vsel %vm55, %v51, 0
  %v102 = vsel %vm55, %v52, 0
  %104 = vmatprep.subr.mxu0 0.0
  %105 = vmatpush1.msra.mxu0 %v53
  %106 = vmatprep.subr.mxu0 0.0
  %107 = vmatpush1.msra.mxu0 %v54
  %108 = vmatprep.subr.mxu0 0.0
  %109 = vmatpush1.msra.mxu0 0.0
  %110 = vmatprep.subr.mxu0 0.0
  %111 = vmatpush1.msra.mxu0 0.0
  %112 = vmatprep.subr.mxu0 0.0
  %113 = vmatpush1.msra.mxu0 0.0
  %114 = vmatprep.subr.mxu0 0.0
  %115 = vmatpush1.msra.mxu0 0.0
  %116 = vmatprep.subr.mxu0 0.0
  %117 = vmatpush1.msra.mxu0 0.0
  %118 = vmatprep.subr.mxu0 0.0
  %119 = vmatpush1.msra.mxu0 0.0
  %120 = vmatprep.subr.mxu0 0.0
  %121 = vmatpush1.msra.mxu0 0.0
  %122 = vmatprep.subr.mxu0 0.0
  %123 = vmatpush1.msra.mxu0 0.0
  %124 = vmatprep.subr.mxu0 0.0
  %125 = vmatpush1.msra.mxu0 0.0
  %126 = vmatprep.subr.mxu0 0.0
  %127 = vmatpush1.msra.mxu0 0.0
  %128 = vmatprep.subr.mxu0 0.0
  %129 = vmatpush1.msra.mxu0 0.0
  %130 = vmatprep.subr.mxu0 0.0
  %131 = vmatpush1.msra.mxu0 0.0
  %132 = vmatprep.subr.mxu0 0.0
  %133 = vmatpush1.msra.mxu0 0.0
  %134 = vmatprep.subr.mxu0 0.0
  %135 = vmatpush1.msra.mxu0 0.0
  %136 = vmatprep.subr.mxu0 0.0
  %137 = vmatpush1.msra.mxu0 0.0
  %138 = vmatprep.subr.mxu0 0.0
  %139 = vmatpush1.msra.mxu0 0.0
  %140 = vmatprep.subr.mxu0 0.0
  %141 = vmatpush1.msra.mxu0 0.0
  %142 = vmatprep.subr.mxu0 0.0
  %143 = vmatpush1.msra.mxu0 0.0
  %144 = vmatprep.subr.mxu0 0.0
  %145 = vmatpush1.msra.mxu0 0.0
  %146 = vmatprep.subr.mxu0 0.0
  %147 = vmatpush1.msra.mxu0 0.0
  %148 = vmatprep.subr.mxu0 0.0
  %149 = vmatpush1.msra.mxu0 0.0
  %150 = vmatprep.subr.mxu0 0.0
  %151 = vmatpush1.msra.mxu0 0.0
  %152 = vmatprep.subr.mxu0 0.0
  %153 = vmatpush1.msra.mxu0 0.0
  %154 = vmatprep.subr.mxu0 0.0
  %155 = vmatpush1.msra.mxu0 0.0
  %156 = vmatprep.subr.mxu0 0.0
  %157 = vmatpush1.msra.mxu0 0.0
  %158 = vmatprep.subr.mxu0 0.0
  %159 = vmatpush1.msra.mxu0 0.0
  %160 = vmatprep.subr.mxu0 0.0
  %161 = vmatpush1.msra.mxu0 0.0
  %162 = vmatprep.subr.mxu0 0.0
  %163 = vmatpush1.msra.mxu0 0.0
  %164 = vmatprep.subr.mxu0 0.0
  %165 = vmatpush1.msra.mxu0 0.0
  %166 = vmatprep.subr.mxu0 0.0
  %167 = vmatpush1.msra.mxu0 0.0
  %168 = vmatprep.mubr.f32.mxu0 0.0
  %169 = vmatmul.mubr.f32.gmra.mrb[0].mxu0 %v57
  %v170 = vpop.f32.mrb[0].mxu0
  %v171 = vadd.f32 0.0, %v170
  %v172 = vpop.f32.mrb[0].mxu0
  %173 = vmatprep.mubr.f32.mxu0 0.0
  %174 = vmatmul.mubr.f32.gmra.mrb[0].mxu0 %v60
  %v175 = vpop.f32.mrb[0].mxu0
  %v176 = vadd.f32 0.0, %v175
  %v177 = vpop.f32.mrb[0].mxu0
  %178 = vmatprep.mubr.f32.mxu0 0.0
  %179 = vmatmul.mubr.f32.gmra.mrb[0].mxu0 %v63
  %v180 = vpop.f32.mrb[0].mxu0
  %v181 = vadd.f32 0.0, %v180
  %v182 = vpop.f32.mrb[0].mxu0
  %183 = vmatprep.mubr.f32.mxu0 0.0
  %184 = vmatmul.mubr.f32.gmra.mrb[0].mxu0 %v66
  %v185 = vpop.f32.mrb[0].mxu0
  %v186 = vadd.f32 0.0, %v185
  %v187 = vpop.f32.mrb[0].mxu0
  %188 = vmatprep.mubr.f32.mxu0 0.0
  %189 = vmatmul.mubr.f32.gmra.mrb[0].mxu0 %v69
  %v190 = vpop.f32.mrb[0].mxu0
  %v191 = vadd.f32 0.0, %v190
  %v192 = vpop.f32.mrb[0].mxu0
  %193 = vmatprep.mubr.f32.mxu0 0.0
  %194 = vmatmul.mubr.f32.gmra.mrb[0].mxu0 %v72
  %v195 = vpop.f32.mrb[0].mxu0
  %v196 = vadd.f32 0.0, %v195
  %v197 = vpop.f32.mrb[0].mxu0
  %198 = vmatprep.mubr.f32.mxu0 0.0
  %199 = vmatmul.mubr.f32.gmra.mrb[0].mxu0 %v75
  %v200 = vpop.f32.mrb[0].mxu0
  %v201 = vadd.f32 0.0, %v200
  %v202 = vpop.f32.mrb[0].mxu0
  %203 = vmatprep.mubr.f32.mxu0 0.0
  %204 = vmatmul.mubr.f32.gmra.mrb[0].mxu0 %v78
  %v205 = vpop.f32.mrb[0].mxu0
  %v206 = vadd.f32 0.0, %v205
  %v207 = vpop.f32.mrb[0].mxu0
  %208 = vmatprep.mubr.f32.mxu0 0.0
  %209 = vmatmul.mubr.f32.gmra.mrb[0].mxu0 %v81
  %v210 = vpop.f32.mrb[0].mxu0
  %v211 = vadd.f32 0.0, %v210
  %v212 = vpop.f32.mrb[0].mxu0
  %213 = vmatprep.mubr.f32.mxu0 0.0
  %214 = vmatmul.mubr.f32.gmra.mrb[0].mxu0 %v84
  %v215 = vpop.f32.mrb[0].mxu0
  %v216 = vadd.f32 0.0, %v215
  %v217 = vpop.f32.mrb[0].mxu0
  %218 = vmatprep.mubr.f32.mxu0 0.0
  %219 = vmatmul.mubr.f32.gmra.mrb[0].mxu0 %v87
  %v220 = vpop.f32.mrb[0].mxu0
  %v221 = vadd.f32 0.0, %v220
  %v222 = vpop.f32.mrb[0].mxu0
  %223 = vmatprep.mubr.f32.mxu0 0.0
  %224 = vmatmul.mubr.f32.gmra.mrb[0].mxu0 %v90
  %v225 = vpop.f32.mrb[0].mxu0
  %v226 = vadd.f32 0.0, %v225
  %v227 = vpop.f32.mrb[0].mxu0
  %228 = vmatprep.mubr.f32.mxu0 0.0
  %229 = vmatmul.mubr.f32.gmra.mrb[0].mxu0 %v93
  %v230 = vpop.f32.mrb[0].mxu0
  %v231 = vadd.f32 0.0, %v230
  %v232 = vpop.f32.mrb[0].mxu0
  %233 = vmatprep.mubr.f32.mxu0 0.0
  %234 = vmatmul.mubr.f32.gmra.mrb[0].mxu0 %v96
  %v235 = vpop.f32.mrb[0].mxu0
  %v236 = vadd.f32 0.0, %v235
  %v237 = vpop.f32.mrb[0].mxu0
  %238 = vmatprep.mubr.f32.mxu0 0.0
  %239 = vmatmul.mubr.f32.gmra.mrb[0].mxu0 %v99
  %v240 = vpop.f32.mrb[0].mxu0
  %v241 = vadd.f32 0.0, %v240
  %v242 = vpop.f32.mrb[0].mxu0
  %243 = vmatprep.mubr.f32.mxu0 0.0
  %244 = vmatmul.mubr.f32.gmra.mrb[0].mxu0 %v102
  %v245 = vpop.f32.mrb[0].mxu0
  %v246 = vadd.f32 0.0, %v245
  %v247 = vpop.f32.mrb[0].mxu0
  %248 = vdwg.mxu0
  %v249 = vld [vmem:[%s4] sm:$0xff]
  %v250 = vld [vmem:[%s4 + $0x8] sm:$0xff]
  %v251 = vld [vmem:[%s4 + $0x10] sm:$0xff]
  %v252 = vld [vmem:[%s4 + $0x18] sm:$0xff]
  %v253 = vld [vmem:[%s4 + $0x20] sm:$0xff]
  %v254 = vld [vmem:[%s4 + $0x28] sm:$0xff]
  %v255 = vld [vmem:[%s4 + $0x30] sm:$0xff]
  %v256 = vld [vmem:[%s4 + $0x38] sm:$0xff]
  %v257 = vld [vmem:[%s4 + $0x40] sm:$0xff]
  %v258 = vld [vmem:[%s4 + $0x48] sm:$0xff]
  %v259 = vld [vmem:[%s4 + $0x50] sm:$0xff]
  %v260 = vld [vmem:[%s4 + $0x58] sm:$0xff]
  %v261 = vld [vmem:[%s4 + $0x60] sm:$0xff]
  %v262 = vld [vmem:[%s4 + $0x68] sm:$0xff]
  %v263 = vld [vmem:[%s4 + $0x70] sm:$0xff]
  %v264 = vld [vmem:[%s4 + $0x78] sm:$0xff]
  %v265 = vld [vmem:[%s2] sm:$0xff]
  %v266 = vld [vmem:[%s2 + $0x8] sm:$0xff]
  %v267 = vld [vmem:[%s2 + $0x10] sm:$0xff]
  %v268 = vld [vmem:[%s2 + $0x18] sm:$0xff]
  %v269 = vld [vmem:[%s2 + $0x20] sm:$0xff]
  %v270 = vld [vmem:[%s2 + $0x28] sm:$0xff]
  %v271 = vld [vmem:[%s2 + $0x30] sm:$0xff]
  %v272 = vld [vmem:[%s2 + $0x38] sm:$0xff]
  %v273 = vld [vmem:[%s2 + $0x40] sm:$0xff]
  %v274 = vld [vmem:[%s2 + $0x48] sm:$0xff]
  %v275 = vld [vmem:[%s2 + $0x50] sm:$0xff]
  %v276 = vld [vmem:[%s2 + $0x58] sm:$0xff]
  %v277 = vld [vmem:[%s2 + $0x60] sm:$0xff]
  %v278 = vld [vmem:[%s2 + $0x68] sm:$0xff]
  %v279 = vld [vmem:[%s2 + $0x70] sm:$0xff]
  %v280 = vld [vmem:[%s2 + $0x78] sm:$0xff]
  %281 = vmatprep.subr.mxu0 0.0
  %282 = vmatpush1.msra.mxu0 %v171
  %283 = vmatprep.subr.mxu0 0.0
  %284 = vmatpush1.msra.mxu0 %v176
  %285 = vmatprep.subr.mxu0 0.0
  %286 = vmatpush1.msra.mxu0 %v181
  %287 = vmatprep.subr.mxu0 0.0
  %288 = vmatpush1.msra.mxu0 %v186
  %289 = vmatprep.subr.mxu0 0.0
  %290 = vmatpush1.msra.mxu0 %v191
  %291 = vmatprep.subr.mxu0 0.0
  %292 = vmatpush1.msra.mxu0 %v196
  %293 = vmatprep.subr.mxu0 0.0
  %294 = vmatpush1.msra.mxu0 %v201
  %295 = vmatprep.subr.mxu0 0.0
  %296 = vmatpush1.msra.mxu0 %v206
  %297 = vmatprep.subr.mxu0 0.0
  %298 = vmatpush1.msra.mxu0 %v211
  %299 = vmatprep.subr.mxu0 0.0
  %300 = vmatpush1.msra.mxu0 %v216
  %301 = vmatprep.subr.mxu0 0.0
  %302 = vmatpush1.msra.mxu0 %v221
  %303 = vmatprep.subr.mxu0 0.0
  %304 = vmatpush1.msra.mxu0 %v226
  %305 = vmatprep.subr.mxu0 0.0
  %306 = vmatpush1.msra.mxu0 %v231
  %307 = vmatprep.subr.mxu0 0.0
  %308 = vmatpush1.msra.mxu0 %v236
  %309 = vmatprep.subr.mxu0 0.0
  %310 = vmatpush1.msra.mxu0 %v241
  %311 = vmatprep.subr.mxu0 0.0
  %312 = vmatpush1.msra.mxu0 %v246
  %313 = vmatprep.subr.mxu0 0.0
  %314 = vmatpush1.msra.mxu0 0.0
  %315 = vmatprep.subr.mxu0 0.0
  %316 = vmatpush1.msra.mxu0 0.0
  %317 = vmatprep.subr.mxu0 0.0
  %318 = vmatpush1.msra.mxu0 0.0
  %319 = vmatprep.subr.mxu0 0.0
  %320 = vmatpush1.msra.mxu0 0.0
  %321 = vmatprep.subr.mxu0 0.0
  %322 = vmatpush1.msra.mxu0 0.0
  %323 = vmatprep.subr.mxu0 0.0
  %324 = vmatpush1.msra.mxu0 0.0
  %325 = vmatprep.subr.mxu0 0.0
  %326 = vmatpush1.msra.mxu0 0.0
  %327 = vmatprep.subr.mxu0 0.0
  %328 = vmatpush1.msra.mxu0 0.0
  %329 = vmatprep.subr.mxu0 0.0
  %330 = vmatpush1.msra.mxu0 0.0
  %331 = vmatprep.subr.mxu0 0.0
  %332 = vmatpush1.msra.mxu0 0.0
  %333 = vmatprep.subr.mxu0 0.0
  %334 = vmatpush1.msra.mxu0 0.0
  %335 = vmatprep.subr.mxu0 0.0
  %336 = vmatpush1.msra.mxu0 0.0
  %337 = vmatprep.subr.mxu0 0.0
  %338 = vmatpush1.msra.mxu0 0.0
  %339 = vmatprep.subr.mxu0 0.0
  %340 = vmatpush1.msra.mxu0 0.0
  %341 = vmatprep.subr.mxu0 0.0
  %342 = vmatpush1.msra.mxu0 0.0
  %343 = vmatprep.subr.mxu0 0.0
  %344 = vmatpush1.msra.mxu0 0.0
  %345 = vmatprep.mubr.f32.mxu0 0.0
  %346 = vmatmul.mubr.f32.gmra.mrb[0].mxu0 %v265
  %v347 = vpop.f32.mrb[0].mxu0
  %v348 = vadd.f32 0.0, %v347
  %v349 = vpop.f32.mrb[0].mxu0
  %350 = vmatprep.mubr.f32.mxu0 0.0
  %351 = vmatmul.mubr.f32.gmra.mrb[0].mxu0 %v266
  %v352 = vpop.f32.mrb[0].mxu0
  %v353 = vadd.f32 0.0, %v352
  %v354 = vpop.f32.mrb[0].mxu0
  %355 = vmatprep.mubr.f32.mxu0 0.0
  %356 = vmatmul.mubr.f32.gmra.mrb[0].mxu0 %v267
  %v357 = vpop.f32.mrb[0].mxu0
  %v358 = vadd.f32 0.0, %v357
  %v359 = vpop.f32.mrb[0].mxu0
  %360 = vmatprep.mubr.f32.mxu0 0.0
  %361 = vmatmul.mubr.f32.gmra.mrb[0].mxu0 %v268
  %v362 = vpop.f32.mrb[0].mxu0
  %v363 = vadd.f32 0.0, %v362
  %v364 = vpop.f32.mrb[0].mxu0
  %365 = vmatprep.mubr.f32.mxu0 0.0
  %366 = vmatmul.mubr.f32.gmra.mrb[0].mxu0 %v269
  %v367 = vpop.f32.mrb[0].mxu0
  %v368 = vadd.f32 0.0, %v367
  %v369 = vpop.f32.mrb[0].mxu0
  %370 = vmatprep.mubr.f32.mxu0 0.0
  %371 = vmatmul.mubr.f32.gmra.mrb[0].mxu0 %v270
  %v372 = vpop.f32.mrb[0].mxu0
  %v373 = vadd.f32 0.0, %v372
  %v374 = vpop.f32.mrb[0].mxu0
  %375 = vmatprep.mubr.f32.mxu0 0.0
  %376 = vmatmul.mubr.f32.gmra.mrb[0].mxu0 %v271
  %v377 = vpop.f32.mrb[0].mxu0
  %v378 = vadd.f32 0.0, %v377
  %v379 = vpop.f32.mrb[0].mxu0
  %380 = vmatprep.mubr.f32.mxu0 0.0
  %381 = vmatmul.mubr.f32.gmra.mrb[0].mxu0 %v272
  %v382 = vpop.f32.mrb[0].mxu0
  %v383 = vadd.f32 0.0, %v382
  %v384 = vpop.f32.mrb[0].mxu0
  %385 = vmatprep.mubr.f32.mxu0 0.0
  %386 = vmatmul.mubr.f32.gmra.mrb[0].mxu0 %v273
  %v387 = vpop.f32.mrb[0].mxu0
  %v388 = vadd.f32 0.0, %v387
  %v389 = vpop.f32.mrb[0].mxu0
  %390 = vmatprep.mubr.f32.mxu0 0.0
  %391 = vmatmul.mubr.f32.gmra.mrb[0].mxu0 %v274
  %v392 = vpop.f32.mrb[0].mxu0
  %v393 = vadd.f32 0.0, %v392
  %v394 = vpop.f32.mrb[0].mxu0
  %395 = vmatprep.mubr.f32.mxu0 0.0
  %396 = vmatmul.mubr.f32.gmra.mrb[0].mxu0 %v275
  %v397 = vpop.f32.mrb[0].mxu0
  %v398 = vadd.f32 0.0, %v397
  %v399 = vpop.f32.mrb[0].mxu0
  %400 = vmatprep.mubr.f32.mxu0 0.0
  %401 = vmatmul.mubr.f32.gmra.mrb[0].mxu0 %v276
  %v402 = vpop.f32.mrb[0].mxu0
  %v403 = vadd.f32 0.0, %v402
  %v404 = vpop.f32.mrb[0].mxu0
  %405 = vmatprep.mubr.f32.mxu0 0.0
  %406 = vmatmul.mubr.f32.gmra.mrb[0].mxu0 %v277
  %v407 = vpop.f32.mrb[0].mxu0
  %v408 = vadd.f32 0.0, %v407
  %v409 = vpop.f32.mrb[0].mxu0
  %410 = vmatprep.mubr.f32.mxu0 0.0
  %411 = vmatmul.mubr.f32.gmra.mrb[0].mxu0 %v278
  %v412 = vpop.f32.mrb[0].mxu0
  %v413 = vadd.f32 0.0, %v412
  %v414 = vpop.f32.mrb[0].mxu0
  %415 = vmatprep.mubr.f32.mxu0 0.0
  %416 = vmatmul.mubr.f32.gmra.mrb[0].mxu0 %v279
  %v417 = vpop.f32.mrb[0].mxu0
  %v418 = vadd.f32 0.0, %v417
  %v419 = vpop.f32.mrb[0].mxu0
  %420 = vmatprep.mubr.f32.mxu0 0.0
  %421 = vmatmul.mubr.f32.gmra.mrb[0].mxu0 %v280
  %v422 = vpop.f32.mrb[0].mxu0
  %v423 = vadd.f32 0.0, %v422
  %v424 = vpop.f32.mrb[0].mxu0
  %425 = vdwg.mxu0
  %v426 = vadd.f32 %v249, %v348
  %v427 = vadd.f32 %v250, %v353
  %v428 = vadd.f32 %v251, %v358
  %v429 = vadd.f32 %v252, %v363
  %v430 = vadd.f32 %v253, %v368
  %v431 = vadd.f32 %v254, %v373
  %v432 = vadd.f32 %v255, %v378
  %v433 = vadd.f32 %v256, %v383
  %v434 = vadd.f32 %v257, %v388
  %v435 = vadd.f32 %v258, %v393
  %v436 = vadd.f32 %v259, %v398
  %v437 = vadd.f32 %v260, %v403
  %v438 = vadd.f32 %v261, %v408
  %v439 = vadd.f32 %v262, %v413
  %v440 = vadd.f32 %v263, %v418
  %v441 = vadd.f32 %v264, %v423
  %442 = vst [vmem:[%s4] sm:$0xff] %v426
  %443 = vst [vmem:[%s4 + $0x8] sm:$0xff] %v427
  %444 = vst [vmem:[%s4 + $0x10] sm:$0xff] %v428
  %445 = vst [vmem:[%s4 + $0x18] sm:$0xff] %v429
  %446 = vst [vmem:[%s4 + $0x20] sm:$0xff] %v430
  %447 = vst [vmem:[%s4 + $0x28] sm:$0xff] %v431
  %448 = vst [vmem:[%s4 + $0x30] sm:$0xff] %v432
  %449 = vst [vmem:[%s4 + $0x38] sm:$0xff] %v433
  %450 = vst [vmem:[%s4 + $0x40] sm:$0xff] %v434
  %451 = vst [vmem:[%s4 + $0x48] sm:$0xff] %v435
  %452 = vst [vmem:[%s4 + $0x50] sm:$0xff] %v436
  %453 = vst [vmem:[%s4 + $0x58] sm:$0xff] %v437
  %454 = vst [vmem:[%s4 + $0x60] sm:$0xff] %v438
  %455 = vst [vmem:[%s4 + $0x68] sm:$0xff] %v439
  %456 = vst [vmem:[%s4 + $0x70] sm:$0xff] %v440
  %457 = vst [vmem:[%s4 + $0x78] sm:$0xff] %v441
  // Predicated region
  $region22: #{gcn_emb_forward.1} parent=0 // pred_check
    %p458 = pneg %p17
  $region23: #{gcn_emb_forward.1} parent=0 // pred_check_branch
    %460 = sbr.rel (%p458) target = $region25
  $region24: #{gcn_emb_forward.1} parent=0 // pred_region
    %v461 = vld [vmem:[%s4] sm:$0xff]
    %v462 = vld [vmem:[%s4 + $0x8] sm:$0xff]
    %v463 = vld [vmem:[%s4 + $0x10] sm:$0xff]
    %v464 = vld [vmem:[%s4 + $0x18] sm:$0xff]
    %v465 = vld [vmem:[%s4 + $0x20] sm:$0xff]
    %v466 = vld [vmem:[%s4 + $0x28] sm:$0xff]
    %v467 = vld [vmem:[%s4 + $0x30] sm:$0xff]
    %v468 = vld [vmem:[%s4 + $0x38] sm:$0xff]
    %v469 = vld [vmem:[%s4 + $0x40] sm:$0xff]
    %v470 = vld [vmem:[%s4 + $0x48] sm:$0xff]
    %v471 = vld [vmem:[%s4 + $0x50] sm:$0xff]
    %v472 = vld [vmem:[%s4 + $0x58] sm:$0xff]
    %v473 = vld [vmem:[%s4 + $0x60] sm:$0xff]
    %v474 = vld [vmem:[%s4 + $0x68] sm:$0xff]
    %v475 = vld [vmem:[%s4 + $0x70] sm:$0xff]
    %v476 = vld [vmem:[%s4 + $0x78] sm:$0xff]
    %v477 = vld [vmem:[%s3] sm:$0x1]
    %v479 = vlaneseq
    %v480 = vshrl.u32 %v479, 7
    %v481 = vsub.s32 0, %v480
    %v482 = vrot.slane %v477, %v481
    %v484 = vadd.f32 %v461, %v482
    %v485 = vadd.f32 %v462, %v482
    %v486 = vadd.f32 %v463, %v482
    %v487 = vadd.f32 %v464, %v482
    %v488 = vadd.f32 %v465, %v482
    %v489 = vadd.f32 %v466, %v482
    %v490 = vadd.f32 %v467, %v482
    %v491 = vadd.f32 %v468, %v482
    %v492 = vadd.f32 %v469, %v482
    %v493 = vadd.f32 %v470, %v482
    %v494 = vadd.f32 %v471, %v482
    %v495 = vadd.f32 %v472, %v482
    %v496 = vadd.f32 %v473, %v482
    %v497 = vadd.f32 %v474, %v482
    %v498 = vadd.f32 %v475, %v482
    %v499 = vadd.f32 %v476, %v482
    %500 = vst [vmem:[%s4] sm:$0xff] %v484
    %501 = vst [vmem:[%s4 + $0x8] sm:$0xff] %v485
    %502 = vst [vmem:[%s4 + $0x10] sm:$0xff] %v486
    %503 = vst [vmem:[%s4 + $0x18] sm:$0xff] %v487
    %504 = vst [vmem:[%s4 + $0x20] sm:$0xff] %v488
    %505 = vst [vmem:[%s4 + $0x28] sm:$0xff] %v489
    %506 = vst [vmem:[%s4 + $0x30] sm:$0xff] %v490
    %507 = vst [vmem:[%s4 + $0x38] sm:$0xff] %v491
    %508 = vst [vmem:[%s4 + $0x40] sm:$0xff] %v492
    %509 = vst [vmem:[%s4 + $0x48] sm:$0xff] %v493
    %510 = vst [vmem:[%s4 + $0x50] sm:$0xff] %v494
    %511 = vst [vmem:[%s4 + $0x58] sm:$0xff] %v495
    %512 = vst [vmem:[%s4 + $0x60] sm:$0xff] %v496
    %513 = vst [vmem:[%s4 + $0x68] sm:$0xff] %v497
    %514 = vst [vmem:[%s4 + $0x70] sm:$0xff] %v498
    %515 = vst [vmem:[%s4 + $0x78] sm:$0xff] %v499
  $region25: #{gcn_emb_forward.1} parent=0 // pred_fallthru
    _
  // Predicated region
  $region26: #{gcn_emb_forward.1} parent=0 // pred_check
    _
  $region27: #{gcn_emb_forward.1} parent=0 // pred_check_branch
    %517 = sbr.rel (0) target = $region29
  $region28: #{gcn_emb_forward.1} parent=0 // pred_region
    _
  $region29: #{gcn_emb_forward.1} parent=0 // pred_fallthru
    _
  // Predicated region
  $region30: #{gcn_emb_forward.1} parent=0 // pred_check
    _
  $region31: #{gcn_emb_forward.1} parent=0 // pred_check_branch
    %519 = sbr.rel (0) target = $region33
  $region32: #{gcn_emb_forward.1} parent=0 // pred_region
    _
  $region33: #{gcn_emb_forward.1} parent=0 // pred_fallthru
    _

</llo_original>
